<compile_context>
chip_gen: v6e
topology: v6e:2x2x1
jax: 0.10.0
libtpu: 0.0.40
codegen_flags: <defaults>
</compile_context>

<pallas_src>
import jax
import jax.numpy as jnp
from jax.experimental import pallas as pl
from jax.experimental.pallas import tpu as pltpu

HIDDEN = 64        # logical hidden width (as in the PyTorch module)
H_PAD = 128        # lane-dense hidden width fed to the MXU
A_PAD = 128        # lane-dense output width (n_action padded up)


def _round_up(x, m):
    return ((x + m - 1) // m) * m


def dqn_kernel(x_ref, w1_ref, b1_ref, w2_ref, b2_ref, o_ref):
    # x: (TB, n_state) bf16, w1: (n_state, H_PAD) bf16, b1: (1, H_PAD) f32
    # w2: (H_PAD, A_PAD) bf16, b2: (1, A_PAD) f32, o: (TB, A_PAD) f32
    x = x_ref[...]
    # hidden = tanh(x @ W1 + b1): bf16 MXU matmul, f32 accumulate, f32 tanh (EUP)
    h = jnp.dot(x, w1_ref[...], preferred_element_type=jnp.float32)
    h = jnp.tanh(h + b1_ref[...])
    # q = h @ W2 + b2: cast hidden to bf16 for the MXU, accumulate in f32
    q = jnp.dot(h.astype(jnp.bfloat16), w2_ref[...],
                preferred_element_type=jnp.float32)
    o_ref[...] = (q + b2_ref[...]).astype(o_ref.dtype)


def dqn_forward(x, w1, b1, w2, b2, *, block_batch=1024):
    """Fused DQN forward. x: (B, n_state) f32; returns (B, n_action) f32."""
    B, n_state = x.shape
    hidden, n_action = w2.shape
    assert w1.shape == (n_state, hidden)

    # Batch tile: multiple of 8 sublanes, capped at block_batch; pad batch to it.
    TB = min(_round_up(block_batch, 8), _round_up(B, 8))
    B_pad = _round_up(B, TB)

    # Pad / cast operands (zero padding leaves results identical).
    x_p = jnp.zeros((B_pad, n_state), jnp.bfloat16).at[:B].set(
        x.astype(jnp.bfloat16))
    w1_p = jnp.zeros((n_state, H_PAD), jnp.bfloat16).at[:, :hidden].set(
        w1.astype(jnp.bfloat16))
    b1_p = jnp.zeros((1, H_PAD), jnp.float32).at[0, :hidden].set(
        b1.astype(jnp.float32).reshape(-1))
    w2_p = jnp.zeros((H_PAD, A_PAD), jnp.bfloat16).at[:hidden, :n_action].set(
        w2.astype(jnp.bfloat16))
    b2_p = jnp.zeros((1, A_PAD), jnp.float32).at[0, :n_action].set(
        b2.astype(jnp.float32).reshape(-1))

    grid = (B_pad // TB,)
    out = pl.pallas_call(
        dqn_kernel,
        out_shape=jax.ShapeDtypeStruct((B_pad, A_PAD), jnp.float32),
        grid_spec=pltpu.PrefetchScalarGridSpec(
            num_scalar_prefetch=0,
            grid=grid,
            in_specs=[
                # x tile streams over the batch grid axis (pipelined).
                pl.BlockSpec((TB, n_state), lambda i: (i, 0)),
                # weights / biases: constant index_map -> stay resident.
                pl.BlockSpec((n_state, H_PAD), lambda i: (0, 0)),
                pl.BlockSpec((1, H_PAD), lambda i: (0, 0)),
                pl.BlockSpec((H_PAD, A_PAD), lambda i: (0, 0)),
                pl.BlockSpec((1, A_PAD), lambda i: (0, 0)),
            ],
            out_specs=pl.BlockSpec((TB, A_PAD), lambda i: (i, 0)),
        ),
        compiler_params=pltpu.CompilerParams(
            dimension_semantics=("parallel",),   # megacore sharding on v7x
        ),
    )(x_p, w1_p, b1_p, w2_p, b2_p)

    return out[:B, :n_action]


def init_dqn_params(key, n_state, n_action, hidden=HIDDEN):
    """PyTorch nn.Linear default init: U[-1/sqrt(fan_in), 1/sqrt(fan_in)]."""
    k1, k2, k3, k4 = jax.random.split(key, 4)
    bound1 = 1.0 / jnp.sqrt(jnp.float32(n_state))
    bound2 = 1.0 / jnp.sqrt(jnp.float32(hidden))
    w1 = jax.random.uniform(k1, (n_state, hidden), jnp.float32, -bound1, bound1)
    b1 = jax.random.uniform(k2, (hidden,), jnp.float32, -bound1, bound1)
    w2 = jax.random.uniform(k3, (hidden, n_action), jnp.float32, -bound2, bound2)
    b2 = jax.random.uniform(k4, (n_action,), jnp.float32, -bound2, bound2)
    return w1, b1, w2, b2


def _reference(x, w1, b1, w2, b2):
    """Pure-JAX reference mirroring the kernel's bf16-input / f32-accumulate math."""
    xb = x.astype(jnp.bfloat16).astype(jnp.float32)
    w1b = w1.astype(jnp.bfloat16).astype(jnp.float32)
    w2b = w2.astype(jnp.bfloat16).astype(jnp.float32)
    h = jnp.tanh(xb @ w1b + b1.reshape(1, -1))
    hb = h.astype(jnp.bfloat16).astype(jnp.float32)
    return hb @ w2b + b2.reshape(1, -1)


if __name__ == "__main__":
    # Small shapes consistent with a typical DQN (CartPole-like).
    batch, n_state, n_action = 2, 4, 2

    key = jax.random.PRNGKey(0)
    kx, kp, kb = jax.random.split(key, 3)
    x = jax.random.normal(kx, (batch, n_state), jnp.float32)
    w1, b1, w2, b2 = init_dqn_params(kp, n_state, n_action)

    # Small-batch (inference / action-selection style) call.
    q = dqn_forward(x, w1, b1, w2, b2)
    jax.block_until_ready(q)
    assert q.shape == (batch, n_action)
    q_ref = _reference(x, w1, b1, w2, b2)
    assert jnp.allclose(q, q_ref, atol=1e-3, rtol=1e-3)
    # Loose check against the full-f32 PyTorch-equivalent math too.
    q_f32 = jnp.tanh(x @ w1 + b1.reshape(1, -1)) @ w2 + b2.reshape(1, -1)
    assert jnp.allclose(q, q_f32, atol=5e-2, rtol=5e-2)

    # Larger replay-buffer-style batch exercising the pipelined grid (>1 step).
    big_batch = 512
    x_big = jax.random.normal(kb, (big_batch, n_state), jnp.float32)
    q_big = dqn_forward(x_big, w1, b1, w2, b2, block_batch=128)
    jax.block_until_ready(q_big)
    assert q_big.shape == (big_batch, n_action)
    assert jnp.allclose(q_big, _reference(x_big, w1, b1, w2, b2),
                        atol=1e-3, rtol=1e-3)

    print("KERNEL_OK")
</pallas_src>

<mosaic_0001>
module attributes {stable_mosaic.version = 11 : i64} {
  func.func @dqn_kernel(%arg0: i32, %arg1: memref<8x4xbf16, #tpu.memory_space<vmem>>, %arg2: memref<4x128xbf16, #tpu.memory_space<vmem>>, %arg3: memref<1x128xf32, #tpu.memory_space<vmem>>, %arg4: memref<128x128xbf16, #tpu.memory_space<vmem>>, %arg5: memref<1x128xf32, #tpu.memory_space<vmem>>, %arg6: memref<8x128xf32, #tpu.memory_space<vmem>>) attributes {dimension_semantics = [#tpu.dimension_semantics<parallel>], iteration_bounds = array<i64: 1>, scalar_prefetch = 0 : i64, scratch_operands = 0 : i64, tpu.core_type = #tpu.core_type<tc>, window_params = [{transform_indices = @transform_0, window_bounds = array<i64: 8, 4>}, {pipeline_mode = #tpu.pipeline_mode<synchronous>, transform_indices = @transform_1, window_bounds = array<i64: 4, 128>}, {pipeline_mode = #tpu.pipeline_mode<synchronous>, transform_indices = @transform_2, window_bounds = array<i64: 1, 128>}, {pipeline_mode = #tpu.pipeline_mode<synchronous>, transform_indices = @transform_3, window_bounds = array<i64: 128, 128>}, {pipeline_mode = #tpu.pipeline_mode<synchronous>, transform_indices = @transform_4, window_bounds = array<i64: 1, 128>}, {transform_indices = @transform_5, window_bounds = array<i64: 8, 128>}]} {
    %c0 = arith.constant 0 : index
    %c0_0 = arith.constant 0 : index
    %0 = vector.load %arg1[%c0, %c0_0] : memref<8x4xbf16, #tpu.memory_space<vmem>>, vector<8x4xbf16>
    %c0_1 = arith.constant 0 : index
    %c0_2 = arith.constant 0 : index
    %1 = vector.load %arg2[%c0_1, %c0_2] : memref<4x128xbf16, #tpu.memory_space<vmem>>, vector<4x128xbf16>
    %cst = arith.constant dense<0.000000e+00> : vector<8x128xf32>
    %2 = tpu.matmul %0, %1, %cst {dimension_numbers = #tpu.dot_dimension_numbers<[1], [0], [0], [1], [0, 0, 1, 1], [], []>} : vector<8x4xbf16>, vector<4x128xbf16>, vector<8x128xf32> -> vector<8x128xf32>
    %c0_3 = arith.constant 0 : index
    %c0_4 = arith.constant 0 : index
    %3 = vector.load %arg3[%c0_3, %c0_4] : memref<1x128xf32, #tpu.memory_space<vmem>>, vector<1x128xf32>
    %4 = vector.broadcast %3 : vector<1x128xf32> to vector<8x128xf32>
    %5 = arith.addf %2, %4 : vector<8x128xf32>
    %6 = math.tanh %5 : vector<8x128xf32>
    %7 = arith.truncf %6 : vector<8x128xf32> to vector<8x128xbf16>
    %c0_5 = arith.constant 0 : index
    %c0_6 = arith.constant 0 : index
    %8 = vector.load %arg4[%c0_5, %c0_6] : memref<128x128xbf16, #tpu.memory_space<vmem>>, vector<128x128xbf16>
    %cst_7 = arith.constant dense<0.000000e+00> : vector<8x128xf32>
    %9 = tpu.matmul %7, %8, %cst_7 {dimension_numbers = #tpu.dot_dimension_numbers<[1], [0], [0], [1], [0, 0, 1, 1], [], []>} : vector<8x128xbf16>, vector<128x128xbf16>, vector<8x128xf32> -> vector<8x128xf32>
    %c0_8 = arith.constant 0 : index
    %c0_9 = arith.constant 0 : index
    %10 = vector.load %arg5[%c0_8, %c0_9] : memref<1x128xf32, #tpu.memory_space<vmem>>, vector<1x128xf32>
    %11 = vector.broadcast %10 : vector<1x128xf32> to vector<8x128xf32>
    %12 = arith.addf %9, %11 : vector<8x128xf32>
    %c0_10 = arith.constant 0 : index
    %c0_11 = arith.constant 0 : index
    %13 = vector.load %arg6[%c0_10, %c0_11] : memref<8x128xf32, #tpu.memory_space<vmem>>, vector<8x128xf32>
    tpu.vector_store %arg6[%c0_10, %c0_11], %12 {strides = array<i32>} : memref<8x128xf32, #tpu.memory_space<vmem>>, vector<8x128xf32>,
    return
  }
  func.func @transform_0(%arg0: i32) -> (i32, i32) {
    %c0_i32 = arith.constant 0 : i32
    %c0_i32_0 = arith.constant 0 : i32
    return %arg0, %c0_i32 : i32, i32
  }
  func.func @transform_1(%arg0: i32) -> (i32, i32) {
    %c0_i32 = arith.constant 0 : i32
    %c0_i32_0 = arith.constant 0 : i32
    %c0_i32_1 = arith.constant 0 : i32
    return %c0_i32, %c0_i32_0 : i32, i32
  }
  func.func @transform_2(%arg0: i32) -> (i32, i32) {
    %c0_i32 = arith.constant 0 : i32
    %c0_i32_0 = arith.constant 0 : i32
    %c0_i32_1 = arith.constant 0 : i32
    return %c0_i32, %c0_i32_0 : i32, i32
  }
  func.func @transform_3(%arg0: i32) -> (i32, i32) {
    %c0_i32 = arith.constant 0 : i32
    %c0_i32_0 = arith.constant 0 : i32
    %c0_i32_1 = arith.constant 0 : i32
    return %c0_i32, %c0_i32_0 : i32, i32
  }
  func.func @transform_4(%arg0: i32) -> (i32, i32) {
    %c0_i32 = arith.constant 0 : i32
    %c0_i32_0 = arith.constant 0 : i32
    %c0_i32_1 = arith.constant 0 : i32
    return %c0_i32, %c0_i32_0 : i32, i32
  }
  func.func @transform_5(%arg0: i32) -> (i32, i32) {
    %c0_i32 = arith.constant 0 : i32
    %c0_i32_0 = arith.constant 0 : i32
    return %arg0, %c0_i32 : i32, i32
  }
}

</mosaic_0001>

<llo_original>
// kernel: tpu_custom_call.1
$region0: #{tpu_custom_call.1}
  #allocation0 [shape = 'u32[]', space=smem, size = 0x4, offset = 0x4, fixed_abs, tag = 'smem constant byte address 0x4 - core index']
  #allocation1 [shape = 'u32[144,128]{1,0:T(1,128)}', space=vmem, size = 0x12000, scoped, tag = 'internal scratch']
  %s0 = inlined_call_operand.vmem [shape: bf16[8,4], index: 0, kind: input, shape index: {}]
  %s1 = inlined_call_operand.vmem [shape: bf16[4,128], index: 1, kind: input, shape index: {}]
  %s2 = inlined_call_operand.vmem [shape: f32[1,128], index: 2, kind: input, shape index: {}]
  %s3 = inlined_call_operand.hbm [shape: bf16[128,128], index: 3, kind: input, shape index: {}]
  %s4 = inlined_call_operand.vmem [shape: f32[1,128], index: 4, kind: input, shape index: {}]
  %s5 = inlined_call_operand.hbm [shape: f32[8,128], index: 5, kind: output, shape index: {}]
  %s6 = sld [smem:[#allocation0]]
  $region34: #{tpu_custom_call.1} parent=0
    _
  %s8 = ssub.s32 1, %s6
  %s9 = scalar_select 0, %s8, %s6
  $region1: #{tpu_custom_call.1} parent=0
    #allocation2 [shape = 'u8[32768]{0}', space=vmem, size = 0x8000, scoped, tag = 'input window, operand 3, single buffered']
    #allocation3 [shape = 's32[1]{0}', space=sflag, size = 0x4, scoped, tag = 'scoped memory for tpu_custom_call.1']
    #allocation4 [shape = 's32[1]{0}', space=sflag, size = 0x4, scoped, tag = 'scoped memory for tpu_custom_call.1']
    #allocation5 [shape = 'u8[4096]{0}', space=vmem, size = 0x1000, scoped, tag = 'output window, operand 0, single buffered']
    %10 = vsyncpa [#allocation3], 0
    %11 = vsyncpa [#allocation4], 0
    // Predicated region
    $region2: #{tpu_custom_call.1} parent=1 // pred_check
      _
    $region3: #{tpu_custom_call.1} parent=1 // pred_check_branch
      %13 = sbr.rel (0) target = $region5
    $region4: #{tpu_custom_call.1} parent=1 // pred_region
      _
    $region5: #{tpu_custom_call.1} parent=1 // pred_fallthru
      _
    // Predicated region
    $region6: #{tpu_custom_call.1} parent=1 // pred_check
      _
    $region7: #{tpu_custom_call.1} parent=1 // pred_check_branch
      %15 = sbr.rel (0) target = $region9
    $region8: #{tpu_custom_call.1} parent=1 // pred_region
      _
    $region9: #{tpu_custom_call.1} parent=1 // pred_fallthru
      _
    // Predicated region
    $region10: #{tpu_custom_call.1} parent=1 // pred_check
      _
    $region11: #{tpu_custom_call.1} parent=1 // pred_check_branch
      %17 = sbr.rel (0) target = $region13
    $region12: #{tpu_custom_call.1} parent=1 // pred_region
      _
    $region13: #{tpu_custom_call.1} parent=1 // pred_fallthru
      _
    // Predicated region
    $region14: #{tpu_custom_call.1} parent=1 // pred_check
      _
    $region15: #{tpu_custom_call.1} parent=1 // pred_check_branch
      %19 = sbr.rel (0) target = $region17
    $region16: #{tpu_custom_call.1} parent=1 // pred_region
      %s21 = ssub.s32 1024, 1024
      %22 = vsyncadd [#allocation3], %s21
      %s23 = sshll.u32 [#allocation2], 4
      %s24 = int_to_ptr.vmem [resolvable:$true] %s23
      %29 = dma.hbm_to_vmem [thread:$0]  %s3, 1024, %s24, [#allocation3], 64, 64, 4
    $region17: #{tpu_custom_call.1} parent=1 // pred_fallthru
      _
    // Predicated region
    $region18: #{tpu_custom_call.1} parent=1 // pred_check
      _
    $region19: #{tpu_custom_call.1} parent=1 // pred_check_branch
      %31 = sbr.rel (0) target = $region21
    $region20: #{tpu_custom_call.1} parent=1 // pred_region
      _
    $region21: #{tpu_custom_call.1} parent=1 // pred_fallthru
      _
    // Predicated region
    $region22: #{tpu_custom_call.1} parent=1 // pred_check
      _
    $region23: #{tpu_custom_call.1} parent=1 // pred_check_branch
      %33 = sbr.rel (0) target = $region25
    $region24: #{tpu_custom_call.1} parent=1 // pred_region
      %34 = dma.done [#allocation3], 1024
    $region25: #{tpu_custom_call.1} parent=1 // pred_fallthru
      _
    %v36 = vld [vmem:[%s0] sm:$0xf]
    %v37 = vld [vmem:[%s1] sm:$0x3]
    %v38 = vld [vmem:[%s2] sm:$0x1]
    %v40 = vlaneseq
    %v41 = vshrl.u32 %v40, 7
    %v42 = vsub.s32 0, %v41
    %v43 = vrot.slane %v38, %v42
    %vm45 = vcmask 31744
    %v47 = vsel %vm45, %v36, 0
    %vm49 = vcmask 1041408
    %v51 = vsel %vm49, %v37, 0
    %53 = vmatprep.subr.bf16.mxu0 0
    %54 = vmatpush1.bf16.msra.mxu0 0
    %55 = vmatprep.subr.bf16.mxu0 0
    %56 = vmatpush1.bf16.msra.mxu0 0
    %57 = vmatprep.subr.bf16.mxu0 0
    %58 = vmatpush1.bf16.msra.mxu0 0
    %59 = vmatprep.subr.bf16.mxu0 0
    %60 = vmatpush1.bf16.msra.mxu0 0
    %61 = vmatprep.subr.bf16.mxu0 0
    %62 = vmatpush1.bf16.msra.mxu0 0
    %63 = vmatprep.subr.bf16.mxu0 0
    %64 = vmatpush1.bf16.msra.mxu0 0
    %65 = vmatprep.subr.bf16.mxu0 0
    %66 = vmatpush1.bf16.msra.mxu0 0
    %67 = vmatprep.subr.bf16.mxu0 0
    %68 = vmatpush1.bf16.msra.mxu0 %v51
    %69 = vmatprep.subr.bf16.mxu0 0
    %70 = vmatpush2.bf16.msra.mxu0 0
    %71 = vmatprep.subr.bf16.mxu0 0
    %72 = vmatpush2.bf16.msra.mxu0 0
    %73 = vmatprep.subr.bf16.mxu0 0
    %74 = vmatpush2.bf16.msra.mxu0 0
    %75 = vmatprep.subr.bf16.mxu0 0
    %76 = vmatpush2.bf16.msra.mxu0 0
    %77 = vmatprep.subr.bf16.mxu0 0
    %78 = vmatpush2.bf16.msra.mxu0 0
    %79 = vmatprep.subr.bf16.mxu0 0
    %80 = vmatpush2.bf16.msra.mxu0 0
    %81 = vmatprep.subr.bf16.mxu0 0
    %82 = vmatpush2.bf16.msra.mxu0 0
    %83 = vmatprep.subr.bf16.mxu0 0
    %84 = vmatpush2.bf16.msra.mxu0 0
    %85 = vmatprep.mubr.bf16.mxu0 0
    %86 = vmatmul.mubr.bf16.gmra.mxu0 %v47
    %v87 = vpop.f32.mrf.mxu0
    %v88 = vadd.f32 %v43, %v87
    %v89 = vpop.f32.mrf.mxu0
    %v90 = vpop.f32.mrf.mxu0
    %v91 = vpop.f32.mrf.mxu0
    %92 = vdwg.mxu0
    %v93 = vtanh.pop %v88
    %v94 = vpack.c.bf16 %v93, %v93
    %v95 = vld [vmem:[#allocation2] sm:$0xf]
    %v96 = vld [vmem:[#allocation2 + $0x4] sm:$0xf]
    %v97 = vld [vmem:[#allocation2 + $0x8] sm:$0xf]
    %v98 = vld [vmem:[#allocation2 + $0xc] sm:$0xf]
    %v99 = vld [vmem:[#allocation2 + $0x10] sm:$0xf]
    %v100 = vld [vmem:[#allocation2 + $0x14] sm:$0xf]
    %v101 = vld [vmem:[#allocation2 + $0x18] sm:$0xf]
    %v102 = vld [vmem:[#allocation2 + $0x1c] sm:$0xf]
    %v103 = vld [vmem:[#allocation2 + $0x20] sm:$0xf]
    %v104 = vld [vmem:[#allocation2 + $0x24] sm:$0xf]
    %v105 = vld [vmem:[#allocation2 + $0x28] sm:$0xf]
    %v106 = vld [vmem:[#allocation2 + $0x2c] sm:$0xf]
    %v107 = vld [vmem:[#allocation2 + $0x30] sm:$0xf]
    %v108 = vld [vmem:[#allocation2 + $0x34] sm:$0xf]
    %v109 = vld [vmem:[#allocation2 + $0x38] sm:$0xf]
    %v110 = vld [vmem:[#allocation2 + $0x3c] sm:$0xf]
    %v111 = vld [vmem:[%s4] sm:$0x1]
    %v113 = vlaneseq
    %v114 = vshrl.u32 %v113, 7
    %v115 = vsub.s32 0, %v114
    %v116 = vrot.slane %v111, %v115
    %v134 = vunpack.c.l.b16 %v95
    %v135 = vunpack.c.l.b16 %v96
    %v136 = vunpack.c.l.b16 %v97
    %v137 = vunpack.c.l.b16 %v98
    %v138 = vunpack.c.l.b16 %v99
    %v139 = vunpack.c.l.b16 %v100
    %v140 = vunpack.c.l.b16 %v101
    %v141 = vunpack.c.l.b16 %v102
    %v142 = vunpack.c.l.b16 %v103
    %v143 = vunpack.c.l.b16 %v104
    %v144 = vunpack.c.l.b16 %v105
    %v145 = vunpack.c.l.b16 %v106
    %v146 = vunpack.c.l.b16 %v107
    %v147 = vunpack.c.l.b16 %v108
    %v148 = vunpack.c.l.b16 %v109
    %v149 = vunpack.c.l.b16 %v110
    %v150 = vpack.c.b16 %v135, %v134
    %v151 = vpack.c.b16 %v137, %v136
    %v152 = vpack.c.b16 %v139, %v138
    %v153 = vpack.c.b16 %v141, %v140
    %v154 = vpack.c.b16 %v143, %v142
    %v155 = vpack.c.b16 %v145, %v144
    %v156 = vpack.c.b16 %v147, %v146
    %v157 = vpack.c.b16 %v149, %v148
    %166 = vmatprep.subr.bf16.mxu0 0
    %167 = vmatpush1.bf16.msra.mxu0 %v157
    %168 = vmatprep.subr.bf16.mxu0 0
    %169 = vmatpush1.bf16.msra.mxu0 %v156
    %170 = vmatprep.subr.bf16.mxu0 0
    %171 = vmatpush1.bf16.msra.mxu0 %v155
    %172 = vmatprep.subr.bf16.mxu0 0
    %173 = vmatpush1.bf16.msra.mxu0 %v154
    %174 = vmatprep.subr.bf16.mxu0 0
    %175 = vmatpush1.bf16.msra.mxu0 %v153
    %176 = vmatprep.subr.bf16.mxu0 0
    %177 = vmatpush1.bf16.msra.mxu0 %v152
    %178 = vmatprep.subr.bf16.mxu0 0
    %179 = vmatpush1.bf16.msra.mxu0 %v151
    %180 = vmatprep.subr.bf16.mxu0 0
    %181 = vmatpush1.bf16.msra.mxu0 %v150
    %182 = vmatprep.subr.bf16.mxu0 0
    %183 = vmatpush2.bf16.msra.mxu0 0
    %184 = vmatprep.subr.bf16.mxu0 0
    %185 = vmatpush2.bf16.msra.mxu0 0
    %186 = vmatprep.subr.bf16.mxu0 0
    %187 = vmatpush2.bf16.msra.mxu0 0
    %188 = vmatprep.subr.bf16.mxu0 0
    %189 = vmatpush2.bf16.msra.mxu0 0
    %190 = vmatprep.subr.bf16.mxu0 0
    %191 = vmatpush2.bf16.msra.mxu0 0
    %192 = vmatprep.subr.bf16.mxu0 0
    %193 = vmatpush2.bf16.msra.mxu0 0
    %194 = vmatprep.subr.bf16.mxu0 0
    %195 = vmatpush2.bf16.msra.mxu0 0
    %196 = vmatprep.subr.bf16.mxu0 0
    %197 = vmatpush2.bf16.msra.mxu0 0
    %198 = vmatprep.mubr.bf16.mxu0 0
    %199 = vmatmul.mubr.bf16.gmra.mxu0 %v94
    %v200 = vpop.f32.mrf.mxu0
    %v201 = vadd.f32 %v116, %v200
    %v202 = vpop.f32.mrf.mxu0
    %v203 = vpop.f32.mrf.mxu0
    %v204 = vpop.f32.mrf.mxu0
    %205 = vdwg.mxu0
    %206 = vst [vmem:[#allocation5] sm:$0xff] %v201
    // Predicated region
    $region26: #{tpu_custom_call.1} parent=1 // pred_check
      _
    $region27: #{tpu_custom_call.1} parent=1 // pred_check_branch
      %208 = sbr.rel (0) target = $region29
    $region28: #{tpu_custom_call.1} parent=1 // pred_region
      %s210 = ssub.s32 128, 128
      %211 = vsyncadd [#allocation4], %s210
      %s213 = sshll.u32 [#allocation5], 4
      %s214 = int_to_ptr.vmem [resolvable:$true] %s213
      %216 = dma.vmem_to_hbm [thread:$0]  %s214, 128, %s5, [#allocation4]
    $region29: #{tpu_custom_call.1} parent=1 // pred_fallthru
      _
    // Predicated region
    $region30: #{tpu_custom_call.1} parent=1 // pred_check
      _
    $region31: #{tpu_custom_call.1} parent=1 // pred_check_branch
      %218 = sbr.rel (0) target = $region33
    $region32: #{tpu_custom_call.1} parent=1 // pred_region
      %219 = dma.done [#allocation4], 128
    $region33: #{tpu_custom_call.1} parent=1 // pred_fallthru
      _
    %220 = vsyncpa [#allocation3], 1
    %221 = vsyncpa [#allocation4], 1

</llo_original>
